<compile_context>
chip_gen: v7x
topology: tpu7x:2x2x1
jax: 0.10.0
libtpu: 0.0.40
codegen_flags: <defaults>
</compile_context>

<pallas_src>
import functools

import jax
import jax.numpy as jnp
from jax.experimental import pallas as pl
from jax.experimental.pallas import tpu as pltpu


def _round_up(n, m):
  return (n + m - 1) // m * m


_BIAS_ROWS = 8            # first 8 sublanes of the slab hold the 3 bias rows
_H1, _H2, _OUT = 64, 32, 2
_LANES = 128
_TB = 1024                # batch tile when the gridded path is used
_NARROW_OUT_B = 1 << 16   # above this B, write a narrow (B, 2) output instead


# ----------------------------------------------------------------------------
# Pallas kernel: fc1 -> ReLU -> fc2 -> ReLU -> fc3, all lane-dense (128 wide).
# Slab layout (rows):
#   [0:8)                      bias rows: row0=b1, row1=b2, row2=b3
#   [8 : 8+d_in_p)             W1 (rows 0:dim_in are data, cols 0:64 data)
#   [8+d_in_p : 8+d_in_p+128)  W2 padded to [128,128] (rows 0:64, cols 0:32)
#   [.. : ..+128)              W3 padded to [128,128] (rows 0:32, cols 0:2)
# All padding is zero, so padded lanes stay exactly zero through bias + ReLU.
# ----------------------------------------------------------------------------
def _mlp_kernel(x_ref, s_ref, out_ref, *, dim_in, d_in_p, lane_dense_out):
  oW1 = _BIAS_ROWS
  oW2 = oW1 + d_in_p
  oW3 = oW2 + _LANES

  x = x_ref[...]                                       # [B, dim_in]
  b1 = s_ref[0:1, :]                                   # [1, 128]
  b2 = s_ref[1:2, :]
  b3 = s_ref[2:3, :]

  h = jnp.dot(x, s_ref[oW1:oW1 + dim_in, :],
              preferred_element_type=jnp.float32) + b1
  h = jnp.maximum(h, 0.0)                              # [B,128]; lanes 64.. == 0

  h = jnp.dot(h, s_ref[oW2:oW2 + _LANES, :],
              preferred_element_type=jnp.float32) + b2
  h = jnp.maximum(h, 0.0)                              # [B,128]; lanes 32.. == 0

  o = jnp.dot(h, s_ref[oW3:oW3 + _LANES, :],
              preferred_element_type=jnp.float32) + b3  # [B,128]; lanes 2.. == 0
  if lane_dense_out:
    out_ref[...] = o
  else:
    out_ref[...] = o[:, 0:_OUT]


# ----------------------------------------------------------------------------
# Parameters (deterministic, synthetic) + one-time packing into ONE slab.
# ----------------------------------------------------------------------------
def _make_linear(key, fan_in, fan_out):
  kw, kb = jax.random.split(key)
  w = jax.random.normal(kw, (fan_in, fan_out), jnp.float32) / jnp.sqrt(fan_in)
  b = 0.01 * jax.random.normal(kb, (fan_out,), jnp.float32)
  return w, b


def init_params(key, dim_in):
  k1, k2, k3 = jax.random.split(key, 3)
  return {
      "fc1": _make_linear(k1, dim_in, _H1),
      "fc2": _make_linear(k2, _H1, _H2),
      "fc3": _make_linear(k3, _H2, _OUT),
  }


def pack_params(params, dim_in, dtype=jnp.float32):
  """Pack biases + all three weights into a single zero-padded, full-lane slab.
  Done ONCE, outside the per-call forward path."""
  d_in_p = _round_up(dim_in, 8)
  rows = _BIAS_ROWS + d_in_p + 2 * _LANES
  slab = jnp.zeros((rows, _LANES), jnp.float32)

  # Bias rows (lane 0 aligned, zero padded to 128 lanes).
  slab = slab.at[0, 0:_H1].set(params["fc1"][1])
  slab = slab.at[1, 0:_H2].set(params["fc2"][1])
  slab = slab.at[2, 0:_OUT].set(params["fc3"][1])

  # Weights, each full 128 lanes wide (zero-padded cols / rows).
  o = _BIAS_ROWS
  slab = slab.at[o:o + dim_in, 0:_H1].set(params["fc1"][0])
  o = _BIAS_ROWS + d_in_p
  slab = slab.at[o:o + _H1, 0:_H2].set(params["fc2"][0])
  o = o + _LANES
  slab = slab.at[o:o + _H2, 0:_OUT].set(params["fc3"][0])

  return {"dim_in": dim_in, "d_in_p": d_in_p,
          "slab": slab.astype(dtype), "dtype": dtype}


# ----------------------------------------------------------------------------
# Wrapper: x.view(-1, dim_in) (NO padding), then one pallas_call.
# ----------------------------------------------------------------------------
def mlp_blackbox_forward(x, packed):
  dim_in = packed["dim_in"]
  d_in_p = packed["d_in_p"]
  dtype = packed["dtype"]
  slab = packed["slab"]

  x2 = x.reshape(-1, dim_in).astype(dtype)     # x.view(-1, dim_in)
  B = x2.shape[0]

  lane_dense = B <= _NARROW_OUT_B              # lane-dense writeback gate
  out_lanes = _LANES if lane_dense else _OUT

  kern = functools.partial(_mlp_kernel, dim_in=dim_in, d_in_p=d_in_p,
                           lane_dense_out=lane_dense)

  if B > _TB:
    # 1-D parallel batch grid: both v7x TensorCores, DMA/compute overlap,
    # bounded VMEM.  Slab BlockSpec has a constant index_map -> stays resident.
    out = pl.pallas_call(
        kern,
        out_shape=jax.ShapeDtypeStruct((B, out_lanes), jnp.float32),
        grid_spec=pltpu.PrefetchScalarGridSpec(
            num_scalar_prefetch=0,
            grid=(pl.cdiv(B, _TB),),
            in_specs=[pl.BlockSpec((_TB, dim_in), lambda i: (i, 0)),
                      pl.BlockSpec(slab.shape, lambda i: (0, 0))],
            out_specs=pl.BlockSpec((_TB, out_lanes), lambda i: (i, 0))),
        compiler_params=pltpu.CompilerParams(
            dimension_semantics=("parallel",)),
    )(x2, slab)
  else:
    # Gridless: everything resident in VMEM (footprint is tiny), 2 input DMAs.
    out = pl.pallas_call(
        kern,
        out_shape=jax.ShapeDtypeStruct((B, out_lanes), jnp.float32),
        in_specs=[pl.BlockSpec(memory_space=pltpu.MemorySpace.VMEM)] * 2,
        out_specs=pl.BlockSpec(memory_space=pltpu.MemorySpace.VMEM),
    )(x2, slab)

  return out[:, 0:_OUT] if lane_dense else out


# ----------------------------------------------------------------------------
# Pure-JAX reference (mirrors the PyTorch forward) for a correctness check.
# ----------------------------------------------------------------------------
def reference_forward(x, params, dim_in):
  x = x.reshape(-1, dim_in)
  h = jnp.maximum(x @ params["fc1"][0] + params["fc1"][1], 0.0)
  h = jnp.maximum(h @ params["fc2"][0] + params["fc2"][1], 0.0)
  return h @ params["fc3"][0] + params["fc3"][1]


if __name__ == "__main__":
  dim_in = 20
  key = jax.random.PRNGKey(0)
  kp, kx = jax.random.split(key)

  params = init_params(kp, dim_in)
  packed = pack_params(params, dim_in)       # one-time packing (hoisted)

  # x with leading structure so that view(-1, dim_in) actually flattens.
  x = jax.random.normal(kx, (2, 2, dim_in), jnp.float32)   # -> [4, 20]

  result = mlp_blackbox_forward(x, packed)
  result = jax.block_until_ready(result)

  ref = reference_forward(x, params, dim_in)
  assert result.shape == (4, 2), result.shape
  assert jnp.allclose(result, ref, rtol=1e-4, atol=1e-5), (result, ref)
  print("KERNEL_OK")
</pallas_src>

<mosaic_0001>
module attributes {stable_mosaic.version = 11 : i64} {
  func.func @_mlp_kernel(%arg0: memref<4x20xf32, #tpu.memory_space<vmem>>, %arg1: memref<288x128xf32, #tpu.memory_space<vmem>>, %arg2: memref<4x128xf32, #tpu.memory_space<vmem>>) attributes {dimension_semantics = [], scalar_prefetch = 0 : i64, scratch_operands = 0 : i64, tpu.core_type = #tpu.core_type<tc>} {
    %c0 = arith.constant 0 : index
    %c0_0 = arith.constant 0 : index
    %0 = vector.load %arg0[%c0, %c0_0] : memref<4x20xf32, #tpu.memory_space<vmem>>, vector<4x20xf32>
    %c0_1 = arith.constant 0 : index
    %c0_2 = arith.constant 0 : index
    %1 = vector.load %arg1[%c0_1, %c0_2] : memref<288x128xf32, #tpu.memory_space<vmem>>, vector<1x128xf32>
    %c1 = arith.constant 1 : index
    %c0_3 = arith.constant 0 : index
    %2 = vector.load %arg1[%c1, %c0_3] : memref<288x128xf32, #tpu.memory_space<vmem>>, vector<1x128xf32>
    %c2 = arith.constant 2 : index
    %c0_4 = arith.constant 0 : index
    %3 = vector.load %arg1[%c2, %c0_4] : memref<288x128xf32, #tpu.memory_space<vmem>>, vector<1x128xf32>
    %c8 = arith.constant 8 : index
    %c0_5 = arith.constant 0 : index
    %4 = vector.load %arg1[%c8, %c0_5] : memref<288x128xf32, #tpu.memory_space<vmem>>, vector<20x128xf32>
    %cst = arith.constant dense<0.000000e+00> : vector<4x128xf32>
    %5 = tpu.matmul %0, %4, %cst {dimension_numbers = #tpu.dot_dimension_numbers<[1], [0], [0], [1], [0, 0, 1, 1], [], []>} : vector<4x20xf32>, vector<20x128xf32>, vector<4x128xf32> -> vector<4x128xf32>
    %6 = vector.broadcast %1 : vector<1x128xf32> to vector<4x128xf32>
    %7 = arith.addf %5, %6 : vector<4x128xf32>
    %cst_6 = arith.constant 0.000000e+00 : f32
    %8 = vector.broadcast %cst_6 : f32 to vector<4x128xf32>
    %9 = arith.maximumf %7, %8 : vector<4x128xf32>
    %c32 = arith.constant 32 : index
    %c0_7 = arith.constant 0 : index
    %10 = vector.load %arg1[%c32, %c0_7] : memref<288x128xf32, #tpu.memory_space<vmem>>, vector<128x128xf32>
    %cst_8 = arith.constant dense<0.000000e+00> : vector<4x128xf32>
    %11 = tpu.matmul %9, %10, %cst_8 {dimension_numbers = #tpu.dot_dimension_numbers<[1], [0], [0], [1], [0, 0, 1, 1], [], []>} : vector<4x128xf32>, vector<128x128xf32>, vector<4x128xf32> -> vector<4x128xf32>
    %12 = vector.broadcast %2 : vector<1x128xf32> to vector<4x128xf32>
    %13 = arith.addf %11, %12 : vector<4x128xf32>
    %cst_9 = arith.constant 0.000000e+00 : f32
    %14 = vector.broadcast %cst_9 : f32 to vector<4x128xf32>
    %15 = arith.maximumf %13, %14 : vector<4x128xf32>
    %c160 = arith.constant 160 : index
    %c0_10 = arith.constant 0 : index
    %16 = vector.load %arg1[%c160, %c0_10] : memref<288x128xf32, #tpu.memory_space<vmem>>, vector<128x128xf32>
    %cst_11 = arith.constant dense<0.000000e+00> : vector<4x128xf32>
    %17 = tpu.matmul %15, %16, %cst_11 {dimension_numbers = #tpu.dot_dimension_numbers<[1], [0], [0], [1], [0, 0, 1, 1], [], []>} : vector<4x128xf32>, vector<128x128xf32>, vector<4x128xf32> -> vector<4x128xf32>
    %18 = vector.broadcast %3 : vector<1x128xf32> to vector<4x128xf32>
    %19 = arith.addf %17, %18 : vector<4x128xf32>
    %c0_12 = arith.constant 0 : index
    %c0_13 = arith.constant 0 : index
    %20 = vector.load %arg2[%c0_12, %c0_13] : memref<4x128xf32, #tpu.memory_space<vmem>>, vector<4x128xf32>
    tpu.vector_store %arg2[%c0_12, %c0_13], %19 {strides = array<i32>} : memref<4x128xf32, #tpu.memory_space<vmem>>, vector<4x128xf32>,
    return
  }
}

</mosaic_0001>

<llo_original>
// kernel: tpu_custom_call.1
$region0: #{tpu_custom_call.1}
  #allocation0 [shape = 'u32[]', space=smem, size = 0x4, offset = 0x4, fixed_abs, tag = 'smem constant byte address 0x4 - core index']
  #allocation1 [shape = 'u32[144,128]{1,0:T(1,128)}', space=vmem, size = 0x12000, scoped, tag = 'internal scratch']
  %s0 = inlined_call_operand.hbm [shape: f32[4,20], index: 0, kind: input, shape index: {}]
  %s1 = inlined_call_operand.hbm [shape: f32[288,128], index: 1, kind: input, shape index: {}]
  %s2 = inlined_call_operand.hbm [shape: f32[4,128], index: 2, kind: output, shape index: {}]
  %s3 = sld [smem:[#allocation0]]
  $region26: #{tpu_custom_call.1} parent=0
    _
  %s5 = ssub.s32 1, %s3
  %s6 = scalar_select 0, %s5, %s3
  $region1: #{tpu_custom_call.1} parent=0
    #allocation2 [shape = 'u8[2048]{0}', space=vmem, size = 0x800, scoped, tag = 'input window, operand 0, single buffered']
    #allocation3 [shape = 's32[1]{0}', space=sflag, size = 0x4, scoped, tag = 'scoped memory for tpu_custom_call.1']
    #allocation4 [shape = 's32[1]{0}', space=sflag, size = 0x4, scoped, tag = 'scoped memory for tpu_custom_call.1']
    #allocation5 [shape = 'u8[147456]{0}', space=vmem, size = 0x24000, scoped, tag = 'input window, operand 1, single buffered']
    #allocation6 [shape = 's32[1]{0}', space=sflag, size = 0x4, scoped, tag = 'scoped memory for tpu_custom_call.1']
    #allocation7 [shape = 'u8[2048]{0}', space=vmem, size = 0x800, scoped, tag = 'output window, operand 0, single buffered']
    %7 = vsyncpa [#allocation3], 0
    %8 = vsyncpa [#allocation6], 0
    %9 = vsyncpa [#allocation4], 0
    // Predicated region
    $region2: #{tpu_custom_call.1} parent=1 // pred_check
      _
    $region3: #{tpu_custom_call.1} parent=1 // pred_check_branch
      %11 = sbr.rel (0) target = $region5
    $region4: #{tpu_custom_call.1} parent=1 // pred_region
      %s13 = ssub.s32 64, 64
      %14 = vsyncadd [#allocation3], %s13
      %s16 = sshll.u32 [#allocation2], 4
      %s17 = int_to_ptr.vmem [resolvable:$true] %s16
      %19 = dma.hbm_to_vmem [thread:$0]  %s0, 64, %s17, [#allocation3]
    $region5: #{tpu_custom_call.1} parent=1 // pred_fallthru
      _
    // Predicated region
    $region6: #{tpu_custom_call.1} parent=1 // pred_check
      _
    $region7: #{tpu_custom_call.1} parent=1 // pred_check_branch
      %21 = sbr.rel (0) target = $region9
    $region8: #{tpu_custom_call.1} parent=1 // pred_region
      %s23 = ssub.s32 4608, 4608
      %24 = vsyncadd [#allocation6], %s23
      %s25 = sshll.u32 [#allocation5], 4
      %s26 = int_to_ptr.vmem [resolvable:$true] %s25
      %31 = dma.hbm_to_vmem [thread:$0]  %s1, 4608, %s26, [#allocation6], 128, 128, 8
    $region9: #{tpu_custom_call.1} parent=1 // pred_fallthru
      _
    // Predicated region
    $region10: #{tpu_custom_call.1} parent=1 // pred_check
      _
    $region11: #{tpu_custom_call.1} parent=1 // pred_check_branch
      %33 = sbr.rel (0) target = $region13
    $region12: #{tpu_custom_call.1} parent=1 // pred_region
      %34 = dma.done [#allocation3], 64
    $region13: #{tpu_custom_call.1} parent=1 // pred_fallthru
      _
    // Predicated region
    $region14: #{tpu_custom_call.1} parent=1 // pred_check
      _
    $region15: #{tpu_custom_call.1} parent=1 // pred_check_branch
      %36 = sbr.rel (0) target = $region17
    $region16: #{tpu_custom_call.1} parent=1 // pred_region
      %37 = dma.done [#allocation6], 4608
    $region17: #{tpu_custom_call.1} parent=1 // pred_fallthru
      _
    %v38 = vld [vmem:[#allocation2] sm:$0xf]
    %v39 = vld [vmem:[#allocation5] sm:$0x1]
    %v40 = vld [vmem:[#allocation5 + $0x1] sm:$0x1]
    %v41 = vld [vmem:[#allocation5 + $0x2] sm:$0x1]
    %v42 = vld [vmem:[#allocation5 + $0x8] sm:$0xff]
    %v43 = vld [vmem:[#allocation5 + $0x10] sm:$0xff]
    %v44 = vld [vmem:[#allocation5 + $0x18] sm:$0xf]
    %v45 = vlaneseq
    %v46 = vshrl.u32 %v45, 7
    %v47 = vsub.s32 0, %v46
    %v48 = vrot.slane %v39, %v47
    %vm49 = vcmask 162816
    %v51 = vsel %vm49, %v38, 0
    %vm53 = vcmask 1043456
    %v55 = vsel %vm53, %v44, 0
    %57 = vmatprep.subr.mxu0 0.0
    %58 = vmatpush1.msra.mxu0 %v42
    %59 = vmatprep.subr.mxu0 0.0
    %60 = vmatpush1.msra.mxu0 %v43
    %61 = vmatprep.subr.mxu0 0.0
    %62 = vmatpush1.msra.mxu0 %v55
    %63 = vmatprep.subr.mxu0 0.0
    %64 = vmatpush1.msra.mxu0 0.0
    %65 = vmatprep.subr.mxu0 0.0
    %66 = vmatpush1.msra.mxu0 0.0
    %67 = vmatprep.subr.mxu0 0.0
    %68 = vmatpush1.msra.mxu0 0.0
    %69 = vmatprep.subr.mxu0 0.0
    %70 = vmatpush1.msra.mxu0 0.0
    %71 = vmatprep.subr.mxu0 0.0
    %72 = vmatpush1.msra.mxu0 0.0
    %73 = vmatprep.subr.mxu0 0.0
    %74 = vmatpush1.msra.mxu0 0.0
    %75 = vmatprep.subr.mxu0 0.0
    %76 = vmatpush1.msra.mxu0 0.0
    %77 = vmatprep.subr.mxu0 0.0
    %78 = vmatpush1.msra.mxu0 0.0
    %79 = vmatprep.subr.mxu0 0.0
    %80 = vmatpush1.msra.mxu0 0.0
    %81 = vmatprep.subr.mxu0 0.0
    %82 = vmatpush1.msra.mxu0 0.0
    %83 = vmatprep.subr.mxu0 0.0
    %84 = vmatpush1.msra.mxu0 0.0
    %85 = vmatprep.subr.mxu0 0.0
    %86 = vmatpush1.msra.mxu0 0.0
    %87 = vmatprep.subr.mxu0 0.0
    %88 = vmatpush1.msra.mxu0 0.0
    %89 = vmatprep.subr.mxu0 0.0
    %90 = vmatpush1.msra.mxu0 0.0
    %91 = vmatprep.subr.mxu0 0.0
    %92 = vmatpush1.msra.mxu0 0.0
    %93 = vmatprep.subr.mxu0 0.0
    %94 = vmatpush1.msra.mxu0 0.0
    %95 = vmatprep.subr.mxu0 0.0
    %96 = vmatpush1.msra.mxu0 0.0
    %97 = vmatprep.subr.mxu0 0.0
    %98 = vmatpush1.msra.mxu0 0.0
    %99 = vmatprep.subr.mxu0 0.0
    %100 = vmatpush1.msra.mxu0 0.0
    %101 = vmatprep.subr.mxu0 0.0
    %102 = vmatpush1.msra.mxu0 0.0
    %103 = vmatprep.subr.mxu0 0.0
    %104 = vmatpush1.msra.mxu0 0.0
    %105 = vmatprep.subr.mxu0 0.0
    %106 = vmatpush1.msra.mxu0 0.0
    %107 = vmatprep.subr.mxu0 0.0
    %108 = vmatpush1.msra.mxu0 0.0
    %109 = vmatprep.subr.mxu0 0.0
    %110 = vmatpush1.msra.mxu0 0.0
    %111 = vmatprep.subr.mxu0 0.0
    %112 = vmatpush1.msra.mxu0 0.0
    %113 = vmatprep.subr.mxu0 0.0
    %114 = vmatpush1.msra.mxu0 0.0
    %115 = vmatprep.subr.mxu0 0.0
    %116 = vmatpush1.msra.mxu0 0.0
    %117 = vmatprep.subr.mxu0 0.0
    %118 = vmatpush1.msra.mxu0 0.0
    %119 = vmatprep.subr.mxu0 0.0
    %120 = vmatpush1.msra.mxu0 0.0
    %121 = vmatprep.mubr.f32.mxu0 0.0
    %122 = vmatmul.mubr.f32.gmra.mrb[0].mxu0 %v51
    %v123 = vpop.f32.mrb[0].mxu0
    %v124 = vadd.f32 %v48, %v123
    %v125 = vpop.f32.mrb[0].mxu0
    %126 = vdwg.mxu0
    %v127 = vmax.f32 %v124, 0.0
    %v128 = vld [vmem:[#allocation5 + $0x20] sm:$0xff]
    %v129 = vld [vmem:[#allocation5 + $0x28] sm:$0xff]
    %v130 = vld [vmem:[#allocation5 + $0x30] sm:$0xff]
    %v131 = vld [vmem:[#allocation5 + $0x38] sm:$0xff]
    %v132 = vld [vmem:[#allocation5 + $0x40] sm:$0xff]
    %v133 = vld [vmem:[#allocation5 + $0x48] sm:$0xff]
    %v134 = vld [vmem:[#allocation5 + $0x50] sm:$0xff]
    %v135 = vld [vmem:[#allocation5 + $0x58] sm:$0xff]
    %v136 = vld [vmem:[#allocation5 + $0x60] sm:$0xff]
    %v137 = vld [vmem:[#allocation5 + $0x68] sm:$0xff]
    %v138 = vld [vmem:[#allocation5 + $0x70] sm:$0xff]
    %v139 = vld [vmem:[#allocation5 + $0x78] sm:$0xff]
    %v140 = vld [vmem:[#allocation5 + $0x80] sm:$0xff]
    %v141 = vld [vmem:[#allocation5 + $0x88] sm:$0xff]
    %v142 = vld [vmem:[#allocation5 + $0x90] sm:$0xff]
    %v143 = vld [vmem:[#allocation5 + $0x98] sm:$0xff]
    %v144 = vlaneseq
    %v145 = vshrl.u32 %v144, 7
    %v146 = vsub.s32 0, %v145
    %v147 = vrot.slane %v40, %v146
    %148 = vmatprep.subr.mxu0 0.0
    %149 = vmatpush1.msra.mxu0 %v128
    %150 = vmatprep.subr.mxu0 0.0
    %151 = vmatpush1.msra.mxu0 %v129
    %152 = vmatprep.subr.mxu0 0.0
    %153 = vmatpush1.msra.mxu0 %v130
    %154 = vmatprep.subr.mxu0 0.0
    %155 = vmatpush1.msra.mxu0 %v131
    %156 = vmatprep.subr.mxu0 0.0
    %157 = vmatpush1.msra.mxu0 %v132
    %158 = vmatprep.subr.mxu0 0.0
    %159 = vmatpush1.msra.mxu0 %v133
    %160 = vmatprep.subr.mxu0 0.0
    %161 = vmatpush1.msra.mxu0 %v134
    %162 = vmatprep.subr.mxu0 0.0
    %163 = vmatpush1.msra.mxu0 %v135
    %164 = vmatprep.subr.mxu0 0.0
    %165 = vmatpush1.msra.mxu0 %v136
    %166 = vmatprep.subr.mxu0 0.0
    %167 = vmatpush1.msra.mxu0 %v137
    %168 = vmatprep.subr.mxu0 0.0
    %169 = vmatpush1.msra.mxu0 %v138
    %170 = vmatprep.subr.mxu0 0.0
    %171 = vmatpush1.msra.mxu0 %v139
    %172 = vmatprep.subr.mxu0 0.0
    %173 = vmatpush1.msra.mxu0 %v140
    %174 = vmatprep.subr.mxu0 0.0
    %175 = vmatpush1.msra.mxu0 %v141
    %176 = vmatprep.subr.mxu0 0.0
    %177 = vmatpush1.msra.mxu0 %v142
    %178 = vmatprep.subr.mxu0 0.0
    %179 = vmatpush1.msra.mxu0 %v143
    %180 = vmatprep.subr.mxu0 0.0
    %181 = vmatpush1.msra.mxu0 0.0
    %182 = vmatprep.subr.mxu0 0.0
    %183 = vmatpush1.msra.mxu0 0.0
    %184 = vmatprep.subr.mxu0 0.0
    %185 = vmatpush1.msra.mxu0 0.0
    %186 = vmatprep.subr.mxu0 0.0
    %187 = vmatpush1.msra.mxu0 0.0
    %188 = vmatprep.subr.mxu0 0.0
    %189 = vmatpush1.msra.mxu0 0.0
    %190 = vmatprep.subr.mxu0 0.0
    %191 = vmatpush1.msra.mxu0 0.0
    %192 = vmatprep.subr.mxu0 0.0
    %193 = vmatpush1.msra.mxu0 0.0
    %194 = vmatprep.subr.mxu0 0.0
    %195 = vmatpush1.msra.mxu0 0.0
    %196 = vmatprep.subr.mxu0 0.0
    %197 = vmatpush1.msra.mxu0 0.0
    %198 = vmatprep.subr.mxu0 0.0
    %199 = vmatpush1.msra.mxu0 0.0
    %200 = vmatprep.subr.mxu0 0.0
    %201 = vmatpush1.msra.mxu0 0.0
    %202 = vmatprep.subr.mxu0 0.0
    %203 = vmatpush1.msra.mxu0 0.0
    %204 = vmatprep.subr.mxu0 0.0
    %205 = vmatpush1.msra.mxu0 0.0
    %206 = vmatprep.subr.mxu0 0.0
    %207 = vmatpush1.msra.mxu0 0.0
    %208 = vmatprep.subr.mxu0 0.0
    %209 = vmatpush1.msra.mxu0 0.0
    %210 = vmatprep.subr.mxu0 0.0
    %211 = vmatpush1.msra.mxu0 0.0
    %212 = vmatprep.mubr.f32.mxu0 0.0
    %213 = vmatmul.mubr.f32.gmra.mrb[0].mxu0 %v127
    %v214 = vpop.f32.mrb[0].mxu0
    %v215 = vadd.f32 %v147, %v214
    %v216 = vpop.f32.mrb[0].mxu0
    %217 = vdwg.mxu0
    %v218 = vmax.f32 %v215, 0.0
    %v219 = vld [vmem:[#allocation5 + $0xa0] sm:$0xff]
    %v220 = vld [vmem:[#allocation5 + $0xa8] sm:$0xff]
    %v221 = vld [vmem:[#allocation5 + $0xb0] sm:$0xff]
    %v222 = vld [vmem:[#allocation5 + $0xb8] sm:$0xff]
    %v223 = vld [vmem:[#allocation5 + $0xc0] sm:$0xff]
    %v224 = vld [vmem:[#allocation5 + $0xc8] sm:$0xff]
    %v225 = vld [vmem:[#allocation5 + $0xd0] sm:$0xff]
    %v226 = vld [vmem:[#allocation5 + $0xd8] sm:$0xff]
    %v227 = vld [vmem:[#allocation5 + $0xe0] sm:$0xff]
    %v228 = vld [vmem:[#allocation5 + $0xe8] sm:$0xff]
    %v229 = vld [vmem:[#allocation5 + $0xf0] sm:$0xff]
    %v230 = vld [vmem:[#allocation5 + $0xf8] sm:$0xff]
    %v231 = vld [vmem:[#allocation5 + $0x100] sm:$0xff]
    %v232 = vld [vmem:[#allocation5 + $0x108] sm:$0xff]
    %v233 = vld [vmem:[#allocation5 + $0x110] sm:$0xff]
    %v234 = vld [vmem:[#allocation5 + $0x118] sm:$0xff]
    %v235 = vlaneseq
    %v236 = vshrl.u32 %v235, 7
    %v237 = vsub.s32 0, %v236
    %v238 = vrot.slane %v41, %v237
    %239 = vmatprep.subr.mxu0 0.0
    %240 = vmatpush1.msra.mxu0 %v219
    %241 = vmatprep.subr.mxu0 0.0
    %242 = vmatpush1.msra.mxu0 %v220
    %243 = vmatprep.subr.mxu0 0.0
    %244 = vmatpush1.msra.mxu0 %v221
    %245 = vmatprep.subr.mxu0 0.0
    %246 = vmatpush1.msra.mxu0 %v222
    %247 = vmatprep.subr.mxu0 0.0
    %248 = vmatpush1.msra.mxu0 %v223
    %249 = vmatprep.subr.mxu0 0.0
    %250 = vmatpush1.msra.mxu0 %v224
    %251 = vmatprep.subr.mxu0 0.0
    %252 = vmatpush1.msra.mxu0 %v225
    %253 = vmatprep.subr.mxu0 0.0
    %254 = vmatpush1.msra.mxu0 %v226
    %255 = vmatprep.subr.mxu0 0.0
    %256 = vmatpush1.msra.mxu0 %v227
    %257 = vmatprep.subr.mxu0 0.0
    %258 = vmatpush1.msra.mxu0 %v228
    %259 = vmatprep.subr.mxu0 0.0
    %260 = vmatpush1.msra.mxu0 %v229
    %261 = vmatprep.subr.mxu0 0.0
    %262 = vmatpush1.msra.mxu0 %v230
    %263 = vmatprep.subr.mxu0 0.0
    %264 = vmatpush1.msra.mxu0 %v231
    %265 = vmatprep.subr.mxu0 0.0
    %266 = vmatpush1.msra.mxu0 %v232
    %267 = vmatprep.subr.mxu0 0.0
    %268 = vmatpush1.msra.mxu0 %v233
    %269 = vmatprep.subr.mxu0 0.0
    %270 = vmatpush1.msra.mxu0 %v234
    %271 = vmatprep.subr.mxu0 0.0
    %272 = vmatpush1.msra.mxu0 0.0
    %273 = vmatprep.subr.mxu0 0.0
    %274 = vmatpush1.msra.mxu0 0.0
    %275 = vmatprep.subr.mxu0 0.0
    %276 = vmatpush1.msra.mxu0 0.0
    %277 = vmatprep.subr.mxu0 0.0
    %278 = vmatpush1.msra.mxu0 0.0
    %279 = vmatprep.subr.mxu0 0.0
    %280 = vmatpush1.msra.mxu0 0.0
    %281 = vmatprep.subr.mxu0 0.0
    %282 = vmatpush1.msra.mxu0 0.0
    %283 = vmatprep.subr.mxu0 0.0
    %284 = vmatpush1.msra.mxu0 0.0
    %285 = vmatprep.subr.mxu0 0.0
    %286 = vmatpush1.msra.mxu0 0.0
    %287 = vmatprep.subr.mxu0 0.0
    %288 = vmatpush1.msra.mxu0 0.0
    %289 = vmatprep.subr.mxu0 0.0
    %290 = vmatpush1.msra.mxu0 0.0
    %291 = vmatprep.subr.mxu0 0.0
    %292 = vmatpush1.msra.mxu0 0.0
    %293 = vmatprep.subr.mxu0 0.0
    %294 = vmatpush1.msra.mxu0 0.0
    %295 = vmatprep.subr.mxu0 0.0
    %296 = vmatpush1.msra.mxu0 0.0
    %297 = vmatprep.subr.mxu0 0.0
    %298 = vmatpush1.msra.mxu0 0.0
    %299 = vmatprep.subr.mxu0 0.0
    %300 = vmatpush1.msra.mxu0 0.0
    %301 = vmatprep.subr.mxu0 0.0
    %302 = vmatpush1.msra.mxu0 0.0
    %303 = vmatprep.mubr.f32.mxu0 0.0
    %304 = vmatmul.mubr.f32.gmra.mrb[0].mxu0 %v218
    %v305 = vpop.f32.mrb[0].mxu0
    %v306 = vadd.f32 %v238, %v305
    %v307 = vpop.f32.mrb[0].mxu0
    %308 = vdwg.mxu0
    %309 = vst [vmem:[#allocation7] sm:$0xf] %v306
    // Predicated region
    $region18: #{tpu_custom_call.1} parent=1 // pred_check
      _
    $region19: #{tpu_custom_call.1} parent=1 // pred_check_branch
      %311 = sbr.rel (0) target = $region21
    $region20: #{tpu_custom_call.1} parent=1 // pred_region
      %s313 = ssub.s32 64, 64
      %314 = vsyncadd [#allocation4], %s313
      %s316 = sshll.u32 [#allocation7], 4
      %s317 = int_to_ptr.vmem [resolvable:$true] %s316
      %319 = dma.vmem_to_hbm [thread:$0]  %s317, 64, %s2, [#allocation4]
    $region21: #{tpu_custom_call.1} parent=1 // pred_fallthru
      _
    // Predicated region
    $region22: #{tpu_custom_call.1} parent=1 // pred_check
      _
    $region23: #{tpu_custom_call.1} parent=1 // pred_check_branch
      %321 = sbr.rel (0) target = $region25
    $region24: #{tpu_custom_call.1} parent=1 // pred_region
      %322 = dma.done [#allocation4], 64
    $region25: #{tpu_custom_call.1} parent=1 // pred_fallthru
      _
    %323 = vsyncpa [#allocation3], 1
    %324 = vsyncpa [#allocation6], 1
    %325 = vsyncpa [#allocation4], 1

</llo_original>
